<compile_context>
chip_gen: v7x
topology: tpu7x:2x2x1
jax: 0.10.0
libtpu: 0.0.40
codegen_flags: <defaults>
</compile_context>

<pallas_src>
import jax
import jax.numpy as jnp
from jax.experimental import pallas as pl
from jax.experimental.pallas import tpu as pltpu


_VMEM_LIMIT = 32 * 1024 * 1024          # safe on v5e/v6e/v7x, > v5e's 16 MiB default
_MAX_BLOCK_BYTES = 2 * 1024 * 1024      # per-block cap -> <= ~8 MiB live with 2x buffering


def _pick_row_tile(rows, max_rows=256):
    """Largest multiple of 8 that divides `rows` (capped), else the full extent."""
    if rows % 8 != 0:
        return rows
    rb, cand = 8, 16
    while cand <= min(rows, max_rows):
        if rows % cand == 0:
            rb = cand
        cand += 8
    return rb


def _pick_lane_tile(hw, rb, max_block_bytes=_MAX_BLOCK_BYTES):
    """Largest multiple of 128 dividing `hw` with an (rb, tile) f32 block under
    the byte budget; falls back to the full extent when hw % 128 != 0."""
    if hw % 128 != 0:
        return hw
    max_lanes = max(128, (max_block_bytes // (4 * max(rb, 8))) // 128 * 128)
    tile, cand = 128, 256
    while cand <= min(hw, max_lanes):
        if hw % cand == 0:
            tile = cand
        cand += 128
    return tile


def _stats_kernel(x_ref, sum_ref, sq_ref):
    # Accumulate per-row partial sums directly in the resident output block
    # (same block index along the last, "arbitrary" grid axis).
    @pl.when(pl.program_id(1) == 0)
    def _init():
        sum_ref[...] = jnp.zeros_like(sum_ref)
        sq_ref[...] = jnp.zeros_like(sq_ref)

    x = x_ref[...].astype(jnp.float32)                      # (rb, tile)
    sum_ref[...] += jnp.sum(x, axis=-1, keepdims=True)      # (rb, 1)
    sq_ref[...] += jnp.sum(x * x, axis=-1, keepdims=True)   # (rb, 1)


def _affine_kernel(x_ref, scale_ref, shift_ref, o_ref):
    # Pure streaming per-row FMA: y = x * scale + shift.
    x = x_ref[...].astype(jnp.float32)
    o_ref[...] = (x * scale_ref[...] + shift_ref[...]).astype(o_ref.dtype)


def batchnorm2d_forward(x, weight, bias, running_mean, running_var,
                        num_batches_tracked, *, eps=1e-5, momentum=0.1,
                        training=True):
    """Forward of the ARENA BatchNorm2d. Returns (out, rm, rv, nbt)."""
    N, C, H, W = x.shape
    HW = H * W
    R = N * C
    M = N * HW

    # NCHW -> (N*C, H*W): contiguous reshape, no HBM transpose / copy.
    x2d = x.reshape(R, HW)

    rb = _pick_row_tile(R)
    tile = _pick_lane_tile(HW, rb)
    grid = (R // rb, HW // tile)

    if training:
        # Pass 1: tiled sum / sum-of-squares reduction (per row = per (n, c)).
        row_sum, row_sq = pl.pallas_call(
            _stats_kernel,
            out_shape=(jax.ShapeDtypeStruct((R, 1), jnp.float32),
                       jax.ShapeDtypeStruct((R, 1), jnp.float32)),
            grid=grid,
            in_specs=[pl.BlockSpec((rb, tile), lambda r, t: (r, t))],
            out_specs=(pl.BlockSpec((rb, 1), lambda r, t: (r, 0)),
                       pl.BlockSpec((rb, 1), lambda r, t: (r, 0))),
            compiler_params=pltpu.CompilerParams(
                dimension_semantics=("parallel", "arbitrary"),
                vmem_limit_bytes=_VMEM_LIMIT),
        )(x2d)

        # Tiny O(N*C) per-channel math in plain JAX.
        ch_sum = row_sum.reshape(N, C).sum(axis=0)
        ch_sq = row_sq.reshape(N, C).sum(axis=0)
        mean = ch_sum / jnp.float32(M)
        # torch.var(..., unbiased=True): divide by M - 1 (matches the reference
        # module). NOTE: M == 1 divides by zero (torch yields nan there too).
        var = (ch_sq - ch_sum * mean) / jnp.float32(M - 1)

        new_running_mean = (1.0 - momentum) * running_mean + momentum * mean
        new_running_var = (1.0 - momentum) * running_var + momentum * var
        new_nbt = num_batches_tracked + 1
    else:
        mean = running_mean.astype(jnp.float32)
        var = running_var.astype(jnp.float32)
        new_running_mean = running_mean
        new_running_var = running_var
        new_nbt = num_batches_tracked

    # Fold mean/var/weight/bias into one per-channel FMA (scale, shift).
    scale = weight.astype(jnp.float32) * jax.lax.rsqrt(var + jnp.float32(eps))
    shift = bias.astype(jnp.float32) - mean * scale
    scale_rows = jnp.tile(scale, N).reshape(R, 1)   # row n*C + c -> channel c
    shift_rows = jnp.tile(shift, N).reshape(R, 1)

    # Pass 2: streaming normalize over a fully parallel grid.
    out2d = pl.pallas_call(
        _affine_kernel,
        out_shape=jax.ShapeDtypeStruct((R, HW), x.dtype),
        grid=grid,
        in_specs=[pl.BlockSpec((rb, tile), lambda r, t: (r, t)),
                  pl.BlockSpec((rb, 1), lambda r, t: (r, 0)),
                  pl.BlockSpec((rb, 1), lambda r, t: (r, 0))],
        out_specs=pl.BlockSpec((rb, tile), lambda r, t: (r, t)),
        compiler_params=pltpu.CompilerParams(
            dimension_semantics=("parallel", "parallel"),
            vmem_limit_bytes=_VMEM_LIMIT),
    )(x2d, scale_rows, shift_rows)

    out = out2d.reshape(N, C, H, W)
    return out, new_running_mean, new_running_var, new_nbt


if __name__ == "__main__":
    key = jax.random.PRNGKey(0)
    kx, kw, kb = jax.random.split(key, 3)
    N, C, H, W = 2, 4, 16, 16
    eps, momentum = 1e-5, 0.1

    x = jax.random.normal(kx, (N, C, H, W), dtype=jnp.float32)
    # Deterministic, slightly non-trivial affine params to exercise the FMA.
    weight = 1.0 + 0.1 * jax.random.normal(kw, (C,), dtype=jnp.float32)
    bias = 0.1 * jax.random.normal(kb, (C,), dtype=jnp.float32)
    running_mean = jnp.zeros((C,), jnp.float32)
    running_var = jnp.ones((C,), jnp.float32)
    nbt0 = jnp.zeros((), jnp.float32)

    out, rm, rv, nbt1 = batchnorm2d_forward(
        x, weight, bias, running_mean, running_var, nbt0,
        eps=eps, momentum=momentum, training=True)
    jax.block_until_ready((out, rm, rv, nbt1))

    # Pure-JAX reference (training branch, unbiased var as in the module).
    mean_ref = jnp.mean(x, axis=(0, 2, 3))
    var_ref = jnp.var(x, axis=(0, 2, 3), ddof=1)
    ref = ((x - mean_ref.reshape(1, C, 1, 1))
           / jnp.sqrt(var_ref.reshape(1, C, 1, 1) + eps)
           * weight.reshape(1, C, 1, 1) + bias.reshape(1, C, 1, 1))
    assert jnp.allclose(out, ref, atol=1e-4, rtol=1e-4), "train output mismatch"
    assert jnp.allclose(rm, momentum * mean_ref, atol=1e-5), "running_mean mismatch"
    assert jnp.allclose(rv, (1.0 - momentum) + momentum * var_ref,
                        atol=1e-5), "running_var mismatch"
    assert int(nbt1) == 1, "num_batches_tracked mismatch"

    # Eval branch (normalizes with the running stats).
    out_eval, *_ = batchnorm2d_forward(
        x, weight, bias, rm, rv, nbt1, eps=eps, momentum=momentum,
        training=False)
    jax.block_until_ready(out_eval)
    ref_eval = ((x - rm.reshape(1, C, 1, 1))
                / jnp.sqrt(rv.reshape(1, C, 1, 1) + eps)
                * weight.reshape(1, C, 1, 1) + bias.reshape(1, C, 1, 1))
    assert jnp.allclose(out_eval, ref_eval, atol=1e-4, rtol=1e-4), "eval mismatch"

    print("KERNEL_OK")
</pallas_src>

<mosaic_0001>
module attributes {stable_mosaic.version = 11 : i64} {
  func.func @_stats_kernel(%arg0: i32, %arg1: i32, %arg2: memref<8x256xf32, #tpu.memory_space<vmem>>, %arg3: memref<8x1xf32, #tpu.memory_space<vmem>>, %arg4: memref<8x1xf32, #tpu.memory_space<vmem>>) attributes {dimension_semantics = [#tpu.dimension_semantics<parallel>, #tpu.dimension_semantics<arbitrary>], iteration_bounds = array<i64: 1, 1>, scalar_prefetch = 0 : i64, scratch_operands = 0 : i64, tpu.core_type = #tpu.core_type<tc>, window_params = [{transform_indices = @transform_0, window_bounds = array<i64: 8, 256>}, {transform_indices = @transform_1, window_bounds = array<i64: 8, 1>}, {transform_indices = @transform_2, window_bounds = array<i64: 8, 1>}]} {
    %c0_i32 = arith.constant 0 : i32
    %0 = arith.cmpi eq, %arg1, %c0_i32 : i32
    %1 = arith.extui %0 : i1 to i32
    %c0_i32_0 = arith.constant 0 : i32
    %2 = arith.cmpi ne, %1, %c0_i32_0 : i32
    scf.if %2 {
      %cst_11 = arith.constant 0.000000e+00 : f32
      %15 = vector.broadcast %cst_11 : f32 to vector<8x1xf32>
      %c0_12 = arith.constant 0 : index
      %c0_13 = arith.constant 0 : index
      %16 = vector.load %arg3[%c0_12, %c0_13] : memref<8x1xf32, #tpu.memory_space<vmem>>, vector<8x1xf32>
      tpu.vector_store %arg3[%c0_12, %c0_13], %15 {strides = array<i32>} : memref<8x1xf32, #tpu.memory_space<vmem>>, vector<8x1xf32>,
      %cst_14 = arith.constant 0.000000e+00 : f32
      %17 = vector.broadcast %cst_14 : f32 to vector<8x1xf32>
      %c0_15 = arith.constant 0 : index
      %c0_16 = arith.constant 0 : index
      %18 = vector.load %arg4[%c0_15, %c0_16] : memref<8x1xf32, #tpu.memory_space<vmem>>, vector<8x1xf32>
      tpu.vector_store %arg4[%c0_15, %c0_16], %17 {strides = array<i32>} : memref<8x1xf32, #tpu.memory_space<vmem>>, vector<8x1xf32>,
    } else {
    }
    %c0 = arith.constant 0 : index
    %c0_1 = arith.constant 0 : index
    %3 = vector.load %arg2[%c0, %c0_1] : memref<8x256xf32, #tpu.memory_space<vmem>>, vector<8x256xf32>
    %c0_2 = arith.constant 0 : index
    %c0_3 = arith.constant 0 : index
    %4 = vector.load %arg3[%c0_2, %c0_3] : memref<8x1xf32, #tpu.memory_space<vmem>>, vector<8x1xf32>
    %cst = arith.constant dense<0.000000e+00> : vector<8xf32>
    %5 = vector.multi_reduction <add>, %3, %cst [1] : vector<8x256xf32> to vector<8xf32>
    %6 = vector.shape_cast %5 : vector<8xf32> to vector<8x1xf32>
    %7 = arith.addf %4, %6 : vector<8x1xf32>
    %c0_4 = arith.constant 0 : index
    %c0_5 = arith.constant 0 : index
    %8 = vector.load %arg3[%c0_4, %c0_5] : memref<8x1xf32, #tpu.memory_space<vmem>>, vector<8x1xf32>
    tpu.vector_store %arg3[%c0_4, %c0_5], %7 {strides = array<i32>} : memref<8x1xf32, #tpu.memory_space<vmem>>, vector<8x1xf32>,
    %c0_6 = arith.constant 0 : index
    %c0_7 = arith.constant 0 : index
    %9 = vector.load %arg4[%c0_6, %c0_7] : memref<8x1xf32, #tpu.memory_space<vmem>>, vector<8x1xf32>
    %10 = arith.mulf %3, %3 : vector<8x256xf32>
    %cst_8 = arith.constant dense<0.000000e+00> : vector<8xf32>
    %11 = vector.multi_reduction <add>, %10, %cst_8 [1] : vector<8x256xf32> to vector<8xf32>
    %12 = vector.shape_cast %11 : vector<8xf32> to vector<8x1xf32>
    %13 = arith.addf %9, %12 : vector<8x1xf32>
    %c0_9 = arith.constant 0 : index
    %c0_10 = arith.constant 0 : index
    %14 = vector.load %arg4[%c0_9, %c0_10] : memref<8x1xf32, #tpu.memory_space<vmem>>, vector<8x1xf32>
    tpu.vector_store %arg4[%c0_9, %c0_10], %13 {strides = array<i32>} : memref<8x1xf32, #tpu.memory_space<vmem>>, vector<8x1xf32>,
    return
  }
  func.func @transform_0(%arg0: i32, %arg1: i32) -> (i32, i32) {
    %c0_i32 = arith.constant 0 : i32
    return %arg0, %arg1 : i32, i32
  }
  func.func @transform_1(%arg0: i32, %arg1: i32) -> (i32, i32) {
    %c0_i32 = arith.constant 0 : i32
    %c0_i32_0 = arith.constant 0 : i32
    return %arg0, %c0_i32 : i32, i32
  }
  func.func @transform_2(%arg0: i32, %arg1: i32) -> (i32, i32) {
    %c0_i32 = arith.constant 0 : i32
    %c0_i32_0 = arith.constant 0 : i32
    return %arg0, %c0_i32 : i32, i32
  }
}

</mosaic_0001>

<llo_original>
// kernel: tpu_custom_call.1
$region0: #{tpu_custom_call.1}
  #allocation0 [shape = 'u32[]', space=smem, size = 0x4, offset = 0x4, fixed_abs, tag = 'smem constant byte address 0x4 - core index']
  #allocation1 [shape = 'u32[144,128]{1,0:T(1,128)}', space=vmem, size = 0x12000, scoped, tag = 'internal scratch']
  %s0 = inlined_call_operand.hbm [shape: f32[8,256], index: 0, kind: input, shape index: {}]
  %s1 = inlined_call_operand.vmem [shape: f32[8,1], index: 1, kind: output, shape index: {0}]
  %s2 = inlined_call_operand.vmem [shape: f32[8,1], index: 2, kind: output, shape index: {1}]
  %3 = xla_tuple %s1, %s2
  %s4 = sld [smem:[#allocation0]]
  $region30: #{tpu_custom_call.1} parent=0
    _
  %s6 = ssub.s32 1, %s4
  %s7 = scalar_select 0, %s6, %s4
  $region1: #{tpu_custom_call.1} parent=0
    #allocation2 [shape = 'u8[8192]{0}', space=vmem, size = 0x2000, scoped, tag = 'input window, operand 0, single buffered']
    #allocation3 [shape = 's32[1]{0}', space=sflag, size = 0x4, scoped, tag = 'scoped memory for tpu_custom_call.1']
    %8 = vsyncpa [#allocation3], 0
    // Predicated region
    $region2: #{tpu_custom_call.1} parent=1 // pred_check
      _
    $region3: #{tpu_custom_call.1} parent=1 // pred_check_branch
      %10 = sbr.rel (0) target = $region5
    $region4: #{tpu_custom_call.1} parent=1 // pred_region
      %s12 = ssub.s32 256, 256
      %13 = vsyncadd [#allocation3], %s12
      %s15 = sshll.u32 [#allocation2], 4
      %s16 = int_to_ptr.vmem [resolvable:$true] %s15
      %18 = dma.hbm_to_vmem [thread:$0]  %s0, 256, %s16, [#allocation3]
    $region5: #{tpu_custom_call.1} parent=1 // pred_fallthru
      _
    // Predicated region
    $region6: #{tpu_custom_call.1} parent=1 // pred_check
      _
    $region7: #{tpu_custom_call.1} parent=1 // pred_check_branch
      %20 = sbr.rel (0) target = $region9
    $region8: #{tpu_custom_call.1} parent=1 // pred_region
      %21 = dma.done [#allocation3], 256
    $region9: #{tpu_custom_call.1} parent=1 // pred_fallthru
      _
    %p22 = scmp.eq.s32.totalorder 0, 0
    // Predicated region
    $region10: #{tpu_custom_call.1} parent=1 // pred_check
      %p23 = pneg %p22
    $region11: #{tpu_custom_call.1} parent=1 // pred_check_branch
      %25 = sbr.rel (%p23) target = $region13
    $region12: #{tpu_custom_call.1} parent=1 // pred_region
      %vm26 = vcmask 7168
      %27 = vst.msk [vmem:[%s1] sm:$0xff] %vm26, 0.0
      %28 = vst.msk [vmem:[%s2] sm:$0xff] %vm26, 0.0
    $region13: #{tpu_custom_call.1} parent=1 // pred_fallthru
      _
    %v29 = vld [vmem:[#allocation2] sm:$0xff]
    %v30 = vld [vmem:[#allocation2 + $0x8] sm:$0xff]
    %v31 = vld [vmem:[%s1] sm:$0xff]
    %v32 = vadd.f32 %v29, %v30
    %33 = vadd.xlane.f32.xlu0 %v32
    %v34 = vpop.xlane.xlu0 %33
    %v35 = vadd.f32 %v31, %v34
    %vm36 = vcmask 7168
    %37 = vst.msk [vmem:[%s1] sm:$0xff] %vm36, %v35
    %v38 = vld [vmem:[%s2] sm:$0xff]
    %v39 = vmul.f32 %v29, %v29
    %v40 = vmul.f32 %v30, %v30
    %v41 = vadd.f32 %v39, %v40
    %42 = vadd.xlane.f32.xlu0 %v41
    %v43 = vpop.xlane.xlu0 %42
    %v44 = vadd.f32 %v38, %v43
    %45 = vst.msk [vmem:[%s2] sm:$0xff] %vm36, %v44
    // Predicated region
    $region14: #{tpu_custom_call.1} parent=1 // pred_check
      _
    $region15: #{tpu_custom_call.1} parent=1 // pred_check_branch
      %47 = sbr.rel (0) target = $region17
    $region16: #{tpu_custom_call.1} parent=1 // pred_region
      _
    $region17: #{tpu_custom_call.1} parent=1 // pred_fallthru
      _
    // Predicated region
    $region18: #{tpu_custom_call.1} parent=1 // pred_check
      _
    $region19: #{tpu_custom_call.1} parent=1 // pred_check_branch
      %49 = sbr.rel (0) target = $region21
    $region20: #{tpu_custom_call.1} parent=1 // pred_region
      _
    $region21: #{tpu_custom_call.1} parent=1 // pred_fallthru
      _
    // Predicated region
    $region22: #{tpu_custom_call.1} parent=1 // pred_check
      _
    $region23: #{tpu_custom_call.1} parent=1 // pred_check_branch
      %51 = sbr.rel (0) target = $region25
    $region24: #{tpu_custom_call.1} parent=1 // pred_region
      _
    $region25: #{tpu_custom_call.1} parent=1 // pred_fallthru
      _
    // Predicated region
    $region26: #{tpu_custom_call.1} parent=1 // pred_check
      _
    $region27: #{tpu_custom_call.1} parent=1 // pred_check_branch
      %53 = sbr.rel (0) target = $region29
    $region28: #{tpu_custom_call.1} parent=1 // pred_region
      _
    $region29: #{tpu_custom_call.1} parent=1 // pred_fallthru
      _
    %54 = vsyncpa [#allocation3], 1

</llo_original>
